<compile_context>
chip_gen: v6e
topology: v6e:2x2x1
jax: 0.10.0
libtpu: 0.0.40
codegen_flags: <defaults>
</compile_context>

<pallas_src>
import math
import functools

import jax
import jax.numpy as jnp
from jax.experimental import pallas as pl
from jax.experimental.pallas import tpu as pltpu


def _embed_gather_kernel(ids_ref, lut_hbm, out_ref, row_buf, sem,
                         *, scale, tile_tokens):
    """Gather `tile_tokens` embedding rows from HBM and scale them.

    ids_ref : SMEM (n_pad,) int32      -- scalar-prefetched token ids
    lut_hbm : HBM  (vocab, d_model)    -- full embedding table (never in VMEM)
    out_ref : VMEM (tile_tokens, d_model) output tile
    row_buf : VMEM (tile_tokens, d_model) gather staging buffer
    sem     : DMA semaphore array (1,), shared by all row copies of this tile
    """
    base = pl.program_id(0) * tile_tokens

    # Issue one row-sized DMA per token in the tile.  All copies signal the
    # same byte-counting DMA semaphore so they can be in flight concurrently.
    @pl.loop(0, tile_tokens)
    def _issue(t):
        tok = ids_ref[base + t]
        pltpu.make_async_copy(
            lut_hbm.at[pl.ds(tok, 1), :],
            row_buf.at[pl.ds(t, 1), :],
            sem.at[0],
        ).start()

    # Drain: wait once per issued copy.  All copies have equal byte counts,
    # so after this loop every row of row_buf is complete (the buffer is only
    # read after the whole loop, so it does not matter which copy's bytes
    # satisfied which wait).
    @pl.loop(0, tile_tokens)
    def _wait(t):
        pltpu.make_async_copy(
            lut_hbm.at[pl.ds(0, 1), :],
            row_buf.at[pl.ds(t, 1), :],
            sem.at[0],
        ).wait()

    # Single VPU pass: scale by sqrt(d_model), cast, lane-dense store.
    out_ref[...] = (row_buf[...].astype(jnp.float32) * scale).astype(out_ref.dtype)


def _round_up(x, m):
    return ((x + m - 1) // m) * m


def embedding_forward(x, lut, *, tile_tokens=128):
    """x: int32 [batch, seq]; lut: [vocab, d_model] -> [batch, seq, d_model].

    Equivalent to PyTorch `Embedding.forward`: lut[x] * sqrt(d_model).
    """
    batch, seq = x.shape
    vocab, d_model = lut.shape
    n = batch * seq

    # Tokens per grid step: multiple of 8 (sublane granularity), capped at n.
    t_eff = _round_up(min(tile_tokens, _round_up(n, 8)), 8)
    n_pad = _round_up(n, t_eff)

    ids = x.reshape(n).astype(jnp.int32)
    if n_pad != n:
        ids = jnp.pad(ids, (0, n_pad - n))  # pad with id 0 (always a valid row)

    scale = float(math.sqrt(d_model))
    kernel = functools.partial(_embed_gather_kernel,
                               scale=scale, tile_tokens=t_eff)

    out_flat = pl.pallas_call(
        kernel,
        out_shape=jax.ShapeDtypeStruct((n_pad, d_model), lut.dtype),
        grid_spec=pltpu.PrefetchScalarGridSpec(
            num_scalar_prefetch=1,                          # ids -> SMEM
            grid=(n_pad // t_eff,),
            in_specs=[pl.BlockSpec(memory_space=pl.ANY)],   # table stays in HBM
            out_specs=pl.BlockSpec((t_eff, d_model),
                                   lambda i, ids_sref: (i, 0)),
            scratch_shapes=[
                pltpu.VMEM((t_eff, d_model), lut.dtype),    # gather staging
                pltpu.SemaphoreType.DMA((1,)),
            ],
        ),
        compiler_params=pltpu.CompilerParams(
            dimension_semantics=("parallel",)),             # megacore on v7x
    )(ids, lut)

    return out_flat[:n].reshape(batch, seq, d_model)


if __name__ == "__main__":
    # Small deterministic setup consistent with Embedding(d_model, vocab).
    d_model = 128
    vocab = 64
    batch, seq = 2, 8

    key = jax.random.PRNGKey(0)
    k_lut, k_ids = jax.random.split(key)

    # nn.Embedding default init: N(0, 1)
    lut = jax.random.normal(k_lut, (vocab, d_model), dtype=jnp.float32)
    x = jax.random.randint(k_ids, (batch, seq), 0, vocab, dtype=jnp.int32)

    out = embedding_forward(x, lut)
    out = jax.block_until_ready(out)

    # Reference: plain JAX gather * sqrt(d_model)
    ref = jnp.take(lut, x, axis=0) * math.sqrt(d_model)

    assert out.shape == (batch, seq, d_model)
    assert jnp.allclose(out, ref, atol=1e-5, rtol=1e-5)
    print("KERNEL_OK")
</pallas_src>

<mosaic_0001>
module attributes {stable_mosaic.version = 11 : i64} {
  func.func @_embed_gather_kernel(%arg0: i32, %arg1: memref<16xi32, #tpu.memory_space<smem>>, %arg2: memref<64x128xf32, #tpu.memory_space<any>>, %arg3: memref<16x128xf32, #tpu.memory_space<vmem>>, %arg4: memref<16x128xf32, #tpu.memory_space<vmem>>, %arg5: memref<1x!tpu.dma_semaphore, #tpu.memory_space<semaphore_mem>>) attributes {dimension_semantics = [#tpu.dimension_semantics<parallel>], iteration_bounds = array<i64: 1>, scalar_prefetch = 1 : i64, scratch_operands = 2 : i64, tpu.core_type = #tpu.core_type<tc>, window_params = [{}, {transform_indices = @transform_1, window_bounds = array<i64: 16, 128>}]} {
    %c16_i32 = arith.constant 16 : i32
    %0 = arith.muli %arg0, %c16_i32 : i32
    %c0_i32 = arith.constant 0 : i32
    %c16_i32_0 = arith.constant 16 : i32
    %1 = arith.addi %c0_i32, %c16_i32_0 : i32
    %c1_i32 = arith.constant 1 : i32
    scf.for %arg6 = %c0_i32 to %1 step %c1_i32  : i32 {
      %c1_i32_9 = arith.constant 1 : i32
      %7 = arith.muli %arg6, %c1_i32_9 : i32
      %c0_i32_10 = arith.constant 0 : i32
      %8 = arith.addi %c0_i32_10, %7 : i32
      %9 = arith.addi %0, %8 : i32
      %10 = arith.index_cast %9 : i32 to index
      %11 = memref.load %arg1[%10] : memref<16xi32, #tpu.memory_space<smem>>
      %c0_i32_11 = arith.constant 0 : i32
      %c0_i32_12 = arith.constant 0 : i32
      %12 = tpu.memref_slice %arg2[%11, %c0_i32_12] : memref<64x128xf32, #tpu.memory_space<any>> -> memref<1x128xf32, #tpu.memory_space<any>>
      %c0_i32_13 = arith.constant 0 : i32
      %13 = tpu.memref_slice %arg4[%8, %c0_i32_13] : memref<16x128xf32, #tpu.memory_space<vmem>> -> memref<1x128xf32, #tpu.memory_space<vmem>>
      %14 = tpu.memref_slice %arg5[%c0_i32_11] : memref<1x!tpu.dma_semaphore, #tpu.memory_space<semaphore_mem>> -> memref<1x!tpu.dma_semaphore, #tpu.memory_space<semaphore_mem>>
      %15 = tpu.memref_squeeze %14 : memref<1x!tpu.dma_semaphore, #tpu.memory_space<semaphore_mem>> -> memref<!tpu.dma_semaphore, #tpu.memory_space<semaphore_mem>>
      tpu.enqueue_dma source(%12 : memref<1x128xf32, #tpu.memory_space<any>>) target(%13 : memref<1x128xf32, #tpu.memory_space<vmem>>) target_semaphore(%15 : memref<!tpu.dma_semaphore, #tpu.memory_space<semaphore_mem>>)
    }
    %c16_i32_1 = arith.constant 16 : i32
    %c0_i32_2 = arith.constant 0 : i32
    %c16_i32_3 = arith.constant 16 : i32
    %2 = arith.addi %c0_i32_2, %c16_i32_3 : i32
    %c1_i32_4 = arith.constant 1 : i32
    scf.for %arg6 = %c0_i32_2 to %2 step %c1_i32_4  : i32 {
      %c1_i32_9 = arith.constant 1 : i32
      %7 = arith.muli %arg6, %c1_i32_9 : i32
      %c0_i32_10 = arith.constant 0 : i32
      %8 = arith.addi %c0_i32_10, %7 : i32
      %c0_i32_11 = arith.constant 0 : i32
      %c0_i32_12 = arith.constant 0 : i32
      %c0_i32_13 = arith.constant 0 : i32
      %9 = tpu.memref_slice %arg2[%c0_i32_12, %c0_i32_13] : memref<64x128xf32, #tpu.memory_space<any>> -> memref<1x128xf32, #tpu.memory_space<any>>
      %c0_i32_14 = arith.constant 0 : i32
      %10 = tpu.memref_slice %arg4[%8, %c0_i32_14] : memref<16x128xf32, #tpu.memory_space<vmem>> -> memref<1x128xf32, #tpu.memory_space<vmem>>
      %11 = tpu.memref_slice %arg5[%c0_i32_11] : memref<1x!tpu.dma_semaphore, #tpu.memory_space<semaphore_mem>> -> memref<1x!tpu.dma_semaphore, #tpu.memory_space<semaphore_mem>>
      %12 = tpu.memref_squeeze %11 : memref<1x!tpu.dma_semaphore, #tpu.memory_space<semaphore_mem>> -> memref<!tpu.dma_semaphore, #tpu.memory_space<semaphore_mem>>
      tpu.wait_dma2 semaphore(%12 : memref<!tpu.dma_semaphore, #tpu.memory_space<semaphore_mem>>) src(%9 : memref<1x128xf32, #tpu.memory_space<any>>) dst(%10 : memref<1x128xf32, #tpu.memory_space<vmem>>)
    }
    %c16_i32_5 = arith.constant 16 : i32
    %c0 = arith.constant 0 : index
    %c0_6 = arith.constant 0 : index
    %3 = vector.load %arg4[%c0, %c0_6] : memref<16x128xf32, #tpu.memory_space<vmem>>, vector<16x128xf32>
    %cst = arith.constant 11.3137083 : f32
    %4 = vector.broadcast %cst : f32 to vector<16x128xf32>
    %5 = arith.mulf %3, %4 : vector<16x128xf32>
    %c0_7 = arith.constant 0 : index
    %c0_8 = arith.constant 0 : index
    %6 = vector.load %arg3[%c0_7, %c0_8] : memref<16x128xf32, #tpu.memory_space<vmem>>, vector<16x128xf32>
    tpu.vector_store %arg3[%c0_7, %c0_8], %5 {strides = array<i32>} : memref<16x128xf32, #tpu.memory_space<vmem>>, vector<16x128xf32>,
    return
  }
  func.func @transform_1(%arg0: i32, %arg1: memref<16xi32, #tpu.memory_space<smem>>) -> (i32, i32) {
    %c0_i32 = arith.constant 0 : i32
    %c0_i32_0 = arith.constant 0 : i32
    return %arg0, %c0_i32 : i32, i32
  }
}

</mosaic_0001>

<llo_original>
// kernel: tpu_custom_call.1
$region0: #{tpu_custom_call.1}
  #allocation0 [shape = 'u32[]', space=smem, size = 0x4, offset = 0x4, fixed_abs, tag = 'smem constant byte address 0x4 - core index']
  #allocation1 [shape = 'u32[144,128]{1,0:T(1,128)}', space=vmem, size = 0x12000, scoped, tag = 'internal scratch']
  #allocation2 [shape = 'f32[16,128]{1,0:T(8,128)}', space=vmem, size = 0x2000, scoped, tag = 'scratch operand']
  #allocation3 [shape = 's32[1]{0}', space=sflag, size = 0x4, scoped, tag = 'scratch operand']
  #allocation4 [shape = 's32[1]{0}', space=sflag, size = 0x4, scoped, tag = 'scoped memory for tpu_custom_call.1']
  #allocation5 [shape = 'u8[512]{0}', space=smem, size = 0x200, scoped, tag = 'prefetched SMEM operand 0']
  #allocation8 [shape = 's32[]', space=sflag, size = 0x4, offset = 0, fixed_abs, tag = 'sflag constant byte address 0x0 - dummy sync flag']
  #allocation9 [shape = 's32[]', space=sflag, size = 0x4, offset = 0, fixed_abs, tag = 'sflag constant byte address 0x0 - dummy sync flag']
  #allocation10 [shape = 'u32[]', space=smem, size = 0x4, offset = 0x44, fixed_abs, tag = 'smem constant byte address 0x44 - assertion arg 0']
  #allocation11 [shape = 'u32[]', space=smem, size = 0x4, offset = 0x48, fixed_abs, tag = 'smem constant byte address 0x48 - assertion arg 1']
  %s0 = inlined_call_operand.hbm [shape: s32[16], index: 0, kind: input, shape index: {}]
  %s1 = inlined_call_operand.hbm [shape: f32[64,128], index: 1, kind: input, shape index: {}]
  %s2 = inlined_call_operand.hbm [shape: f32[16,128], index: 2, kind: output, shape index: {}]
  %s3 = sld [smem:[#allocation0]]
  $region28: #{tpu_custom_call.1} parent=0
    _
  %s5 = ssub.s32 1, %s3
  %s6 = scalar_select 0, %s5, %s3
  %8 = dma.hbm_to_smem %s0, 16, [#allocation5], [#allocation4]
  %9 = dma.done [#allocation4], 16
  %10 = sfence
  $region1: #{tpu_custom_call.1} parent=0
    #allocation6 [shape = 'u8[8192]{0}', space=vmem, size = 0x2000, scoped, tag = 'output window, operand 0, single buffered']
    #allocation7 [shape = 's32[1]{0}', space=sflag, size = 0x4, scoped, tag = 'scoped memory for tpu_custom_call.1']
    %11 = vsyncpa [#allocation7], 0
    %s12 = smul.u32 0, 16
    loop: start=0, step=1, limit=16
    $region2: #{tpu_custom_call.1} parent=1 // loop_pre_header
      _
    $region3: #{tpu_custom_call.1} parent=1 // loop_header
      %s14 = sphi 0, %s18
      %p15 = scmp.ge.s32.totalorder %s14, 16
    $region4: #{tpu_custom_call.1} parent=1 // loop_header_branch
      %17 = sbr.rel (%p15) target = $region8
    $region5: #{tpu_custom_call.1} parent=1 // loop_body
      %s19 = sadd.s32 %s12, %s14
      %s20 = sld [smem:[#allocation5 + %s19]]
      %s21 = smul.addr %s20, 16
      %s22 = scalar_lea.hbm %s1, %s21
      %s23 = scalar_lea.vmem [#allocation2], %s14
      // Predicated region
      $region9: #{tpu_custom_call.1} parent=5 // pred_check
        _
      $region10: #{tpu_custom_call.1} parent=5 // pred_check_branch
        %25 = sbr.rel target = $region12
      $region11: #{tpu_custom_call.1} parent=5 // pred_region
        %26 = sst [smem:[#allocation10]] [#allocation9]
        %27 = sst [smem:[#allocation11]] [#allocation8]
      $region12: #{tpu_custom_call.1} parent=5 // pred_fallthru
        _
      %29 = shalt.err (0)
      %s31 = sshll.u32 %s23, 4
      %s32 = int_to_ptr.vmem [resolvable:$true] %s31
      %34 = dma.hbm_to_vmem [thread:$0]  %s22, 16, %s32, [#allocation3]
    $region6: #{tpu_custom_call.1} parent=1 // loop_footer
      %s18 = sadd.s32 1, %s14
    $region7: #{tpu_custom_call.1} parent=1 // loop_footer_branch
      %13 = sbr.rel target = $region3
    $region8: #{tpu_custom_call.1} parent=1 // loop_exit
      _
    loop: start=0, step=1, limit=16
    $region13: #{tpu_custom_call.1} parent=1 // loop_pre_header
      _
    $region14: #{tpu_custom_call.1} parent=1 // loop_header
      %s36 = sphi 0, %s40
      %p37 = scmp.ge.s32.totalorder %s36, 16
    $region15: #{tpu_custom_call.1} parent=1 // loop_header_branch
      %39 = sbr.rel (%p37) target = $region19
    $region16: #{tpu_custom_call.1} parent=1 // loop_body
      %s41 = smul.u32 1, 1
      %s42 = sshll.u32 %s41, 4
      %43 = dma.done [#allocation3], %s42
    $region17: #{tpu_custom_call.1} parent=1 // loop_footer
      %s40 = sadd.s32 1, %s36
    $region18: #{tpu_custom_call.1} parent=1 // loop_footer_branch
      %35 = sbr.rel target = $region14
    $region19: #{tpu_custom_call.1} parent=1 // loop_exit
      _
    %v44 = vld [vmem:[#allocation2] sm:$0xff]
    %v45 = vld [vmem:[#allocation2 + $0x8] sm:$0xff]
    %v46 = vmul.f32 %v44, 11.313708
    %v47 = vmul.f32 %v45, 11.313708
    %48 = vst [vmem:[#allocation6] sm:$0xff] %v46
    %49 = vst [vmem:[#allocation6 + $0x8] sm:$0xff] %v47
    // Predicated region
    $region20: #{tpu_custom_call.1} parent=1 // pred_check
      _
    $region21: #{tpu_custom_call.1} parent=1 // pred_check_branch
      %51 = sbr.rel (0) target = $region23
    $region22: #{tpu_custom_call.1} parent=1 // pred_region
      %s53 = ssub.s32 256, 256
      %54 = vsyncadd [#allocation7], %s53
      %s55 = sshll.u32 [#allocation6], 4
      %s56 = int_to_ptr.vmem [resolvable:$true] %s55
      %61 = dma.vmem_to_hbm [thread:$0]  %s56, 256, %s2, [#allocation7], 128, 128, 8
    $region23: #{tpu_custom_call.1} parent=1 // pred_fallthru
      _
    // Predicated region
    $region24: #{tpu_custom_call.1} parent=1 // pred_check
      _
    $region25: #{tpu_custom_call.1} parent=1 // pred_check_branch
      %63 = sbr.rel (0) target = $region27
    $region26: #{tpu_custom_call.1} parent=1 // pred_region
      %64 = dma.done [#allocation7], 256
    $region27: #{tpu_custom_call.1} parent=1 // pred_fallthru
      _
    %65 = vsyncpa [#allocation7], 1
  %66 = vsyncmov [#allocation3]
  %s67 = vpop.sfrf %66
  %p68 = scmp.eq.s32.totalorder %s67, 0
  %p69 = pneg %p68
  %71 = shalt.err (%p69)

</llo_original>
